<compile_context>
chip_gen: v5e
topology: v5e:2x2
jax: 0.10.0
libtpu: 0.0.40
codegen_flags: <defaults>
</compile_context>

<pallas_src>
import functools
import math

import jax
import jax.numpy as jnp
import numpy as np
from jax import lax
from jax.experimental import pallas as pl
from jax.experimental.pallas import tpu as pltpu


def _ru(x, m):
    return ((x + m - 1) // m) * m


def _erf_f32(x):
    # Abramowitz & Stegun 7.1.26 rational approximation of erf, |err| <= 1.5e-7,
    # matching torch's exact (erf-based) nn.GELU at float32-level accuracy.
    p = 0.3275911
    a1, a2, a3, a4, a5 = (0.254829592, -0.284496736, 1.421413741,
                          -1.453152027, 1.061405429)
    ax = jnp.abs(x)
    # approx=True -> single EUP vrcp; ~2^-12 error, far below test tolerance.
    t = pl.reciprocal(1.0 + p * ax, approx=True)
    poly = ((((a5 * t + a4) * t + a3) * t + a2) * t + a1) * t
    y = 1.0 - poly * jnp.exp(-ax * ax)
    return jnp.where(x >= 0.0, y, -y)


def _gelu_exact(x):
    return 0.5 * x * (1.0 + _erf_f32(x * (1.0 / math.sqrt(2.0))))


def _attfu_kernel(l_pro_ref, l_tem_ref, f32w_ref, mlpw_ref, out_ref, *,
                  channels, r, hidden, n_tem_c, w2_row, w2_col, tem_row, bias_row):
    C, H, NC = channels, hidden, n_tem_c
    f32 = jnp.float32
    nt = (((1,), (1,)), ((), ()))      # contract last dims of both operands: x @ w.T

    l_pro = l_pro_ref[...]             # (B, C)    f32
    l_tem = l_tem_ref[...]             # (B, N*C)  f32, lane-dense (no in-kernel reduction)

    # f32 slab layout (built once in pack_params); all slices start at lane 0 or lane 128
    # and at sublane offsets that are multiples of 8.
    w1t_pro = f32w_ref[0:r, 0:C]                                       # (r, C)
    w2      = f32w_ref[w2_row:w2_row + r, w2_col:w2_col + 2 * C]       # (r, 2C) (in, out)
    w1t_tem = f32w_ref[tem_row:tem_row + r, 0:NC]                      # (r, N*C), 1/N folded,
                                                                       #   tiled N times along K
    bias2   = f32w_ref[bias_row:bias_row + 2, :]                       # (2, W)
    b1 = bias2[0:1, 0:H]                                               # (1, H)
    b2 = bias2[1:2, 0:C]                                               # (1, C)

    # cat([l_pro, mean(l_tem)], -1) @ W1  ==  l_pro @ W1[:C] + l_tem_flat @ tile(W1[C:]/N, N)
    # (split matmul over the reduction dim; no in-kernel concatenate, no sublane sum)
    h = (lax.dot_general(l_pro, w1t_pro, nt, preferred_element_type=f32) +
         lax.dot_general(l_tem, w1t_tem, nt, preferred_element_type=f32))
    h = jnp.maximum(h, 0.0)                                            # ReLU (f32)
    att = jax.nn.sigmoid(jnp.dot(h, w2, preferred_element_type=f32))   # (B, 2C) f32

    # bf16 slab: rows [0:2C) -> mlp.fc1.weight (in, out); rows [2C:3C) -> mlp.fc2.weight[:, :C]^T
    # Weights stay bf16 and activations are cast to bf16 *only* as MXU operands;
    # accumulation and all elementwise math stay f32 (v5e-safe).
    w_m1  = mlpw_ref[0:2 * C, :]                                       # (2C, H) bf16
    w_m2t = mlpw_ref[2 * C:3 * C, :]                                   # (C, H)  bf16

    m = jnp.dot(att.astype(jnp.bfloat16), w_m1, preferred_element_type=f32) + b1
    m = _gelu_exact(m)                                                 # f32 elementwise
    # Only the first C output columns are returned, so w_m2 / b_m2 were pre-sliced to C cols.
    out = (lax.dot_general(m.astype(jnp.bfloat16), w_m2t, nt, preferred_element_type=f32)
           + b2 + att[:, :C])
    out_ref[...] = out                                                 # (B, C) f32 store


def pack_params(params, channels, n_tem):
    """One-time packing of all weights (call at init, NOT per forward).

    NOTE: weights here are stored (in, out); real PyTorch nn.Linear weights are (out, in),
    so importing an actual checkpoint requires a transpose before packing.
    """
    C = channels
    N = int(n_tem)
    w_fc1 = np.asarray(params["w_fc1"], np.float32)              # (2C, r)  (in, out)
    w_fc2 = np.asarray(params["w_fc2"], np.float32)              # (r, 2C)
    w_m1 = np.asarray(params["w_m1"], np.float32)                # (2C, H)
    b_m1 = np.asarray(params["b_m1"], np.float32).reshape(-1)    # (H,)
    w_m2 = np.asarray(params["w_m2"], np.float32)                # (H, 2C)
    b_m2 = np.asarray(params["b_m2"], np.float32).reshape(-1)    # (2C,)
    r = w_fc1.shape[1]
    H = w_m1.shape[1]
    NC = N * C
    assert w_fc1.shape == (2 * C, r) and w_fc2.shape == (r, 2 * C)
    assert w_m1.shape == (2 * C, H) and w_m2.shape == (H, 2 * C)

    rg = _ru(max(r, 1), 8)                       # rows per fc-weight block (sublane-aligned)
    W = _ru(max(H, NC, 2 * C, 128), 128)         # slab lane width (multiple of 128)

    # Row layout: every block starts at lane 0 (or exactly lane 128) and a sublane offset
    # that is a multiple of 8. If w2 fits next to w1t_pro it shares row-group 0 at the
    # 128-lane tile boundary (saves one row-group of padded DMA).
    w2_shares = (C <= 128) and (128 + 2 * C <= W)
    if w2_shares:
        w2_row, w2_col = 0, 128
        tem_row = rg
    else:
        w2_row, w2_col = rg, 0
        tem_row = 2 * rg
    bias_row = tem_row + rg
    n_rows = _ru(bias_row + 2, 8)

    w1t_pro = w_fc1[:C, :].T.copy()                              # (r, C)
    # tem half: fold the mean's 1/N and tile N times along K so the kernel consumes the
    # flattened (B, N*C) l_tem directly (no in-kernel reduction).
    w1t_tem = np.tile(w_fc1[C:, :].T / float(N), (1, N))         # (r, N*C)

    f32_slab = np.zeros((n_rows, W), np.float32)
    f32_slab[0:r, 0:C] = w1t_pro
    f32_slab[w2_row:w2_row + r, w2_col:w2_col + 2 * C] = w_fc2
    f32_slab[tem_row:tem_row + r, 0:NC] = w1t_tem
    f32_slab[bias_row, 0:H] = b_m1
    f32_slab[bias_row + 1, 0:C] = b_m2[:C]                       # pre-sliced to C columns

    bf16_slab = np.zeros((_ru(3 * C, 16), H), np.float32)        # bf16 sublane tile = 16
    bf16_slab[0:2 * C, :] = w_m1
    bf16_slab[2 * C:3 * C, :] = w_m2[:, :C].T                    # pre-sliced + transposed

    return dict(
        f32_slab=jnp.asarray(f32_slab, jnp.float32),
        bf16_slab=jnp.asarray(bf16_slab, jnp.bfloat16),
        r=int(r), hidden=int(H), n_tem=int(N),
        w2_row=int(w2_row), w2_col=int(w2_col),
        tem_row=int(tem_row), bias_row=int(bias_row),
    )


def attfu_forward(l_pro, l_tem, packed, channels):
    B, n_pro, c_in = l_pro.shape
    C = channels
    assert n_pro == 1 and c_in == C
    assert l_tem.shape[0] == B and l_tem.shape[2] == C
    assert l_tem.shape[1] == packed["n_tem"], "mean 1/N + K-tiling were baked for this N_tem"
    r, H = packed["r"], packed["hidden"]
    NC = packed["n_tem"] * C

    vmem = pl.BlockSpec(memory_space=pltpu.MemorySpace.VMEM)
    kernel = functools.partial(
        _attfu_kernel, channels=C, r=r, hidden=H, n_tem_c=NC,
        w2_row=packed["w2_row"], w2_col=packed["w2_col"],
        tem_row=packed["tem_row"], bias_row=packed["bias_row"])

    flops = 2 * B * (C * r + NC * r + r * 2 * C + 2 * C * H + H * C)
    transcendentals = B * (2 * C + H)                            # sigmoid + gelu exp
    bytes_accessed = int(B * C * 4 + B * NC * 4 +
                         packed["f32_slab"].size * 4 +
                         packed["bf16_slab"].size * 2 + B * C * 4)

    out2d = pl.pallas_call(
        kernel,
        out_shape=jax.ShapeDtypeStruct((B, C), jnp.float32),
        in_specs=[vmem, vmem, vmem, vmem],
        out_specs=vmem,
        cost_estimate=pl.CostEstimate(flops=flops,
                                      transcendentals=transcendentals,
                                      bytes_accessed=bytes_accessed),
    )(l_pro.reshape(B, C),          # (B, C)
      l_tem.reshape(B, NC),         # (B, N*C) metadata-only flatten, lane-dense in kernel
      packed["f32_slab"], packed["bf16_slab"])
    # (B, C) -> (B, 1, C) is metadata-only, outside the kernel.
    return out2d.reshape(B, 1, C)


def attfu_ref(l_pro, l_tem, params, channels):
    """Pure-JAX reference mirroring the PyTorch forward exactly (all f32)."""
    l_tem_m = jnp.mean(l_tem, axis=1, keepdims=True)
    l_fu = jnp.concatenate([l_pro, l_tem_m], axis=2)
    h = jax.nn.relu(l_fu @ params["w_fc1"])
    att = jax.nn.sigmoid(h @ params["w_fc2"])
    m = jax.nn.gelu(att @ params["w_m1"] + params["b_m1"], approximate=False)
    m = m @ params["w_m2"] + params["b_m2"]
    out = m + att
    return out[:, :, :channels]


def attfu_ref_bf16emu(l_pro, l_tem, params, channels):
    """Reference with the kernel's bf16 rounding points emulated (f32 accumulation)."""
    bf = lambda x: x.astype(jnp.bfloat16).astype(jnp.float32)
    l_tem_m = jnp.mean(l_tem, axis=1, keepdims=True)
    l_fu = jnp.concatenate([l_pro, l_tem_m], axis=2)
    h = jax.nn.relu(l_fu @ params["w_fc1"])
    att = jax.nn.sigmoid(h @ params["w_fc2"])
    m = bf(att) @ bf(params["w_m1"]) + params["b_m1"]
    m = jax.nn.gelu(m, approximate=False)
    m = bf(m) @ bf(params["w_m2"]) + params["b_m2"]
    out = m + att
    return out[:, :, :channels]


def init_params(key, channels, ratio=0.25):
    """Deterministic synthetic parameters (shapes per ATTFu.__init__), stored (in, out)."""
    C = channels
    r = int(ratio * C)          # fc hidden
    H = 4 * 2 * C               # Mlp hidden_features
    ks = jax.random.split(key, 6)

    def lin(k, fan_in, fan_out):
        bound = 1.0 / math.sqrt(fan_in)
        return jax.random.uniform(k, (fan_in, fan_out), jnp.float32, -bound, bound)

    return dict(
        w_fc1=lin(ks[0], 2 * C, r),          # Linear(2C, r, bias=False)
        w_fc2=lin(ks[1], r, 2 * C),          # Linear(r, 2C, bias=False)
        w_m1=lin(ks[2], 2 * C, H),           # Mlp.fc1 weight
        b_m1=jax.random.uniform(ks[3], (1, H), jnp.float32,
                                -1.0 / math.sqrt(2 * C), 1.0 / math.sqrt(2 * C)),
        w_m2=lin(ks[4], H, 2 * C),           # Mlp.fc2 weight
        b_m2=jax.random.uniform(ks[5], (1, 2 * C), jnp.float32,
                                -1.0 / math.sqrt(H), 1.0 / math.sqrt(H)),
    )


if __name__ == "__main__":
    B, C, N_TEM = 2, 32, 8      # l_pro is a single prompt token: cat(dim=2) requires N_pro == 1
    key = jax.random.PRNGKey(0)
    kp, kt, kw = jax.random.split(key, 3)
    l_pro = jax.random.normal(kp, (B, 1, C), jnp.float32)
    l_tem = jax.random.normal(kt, (B, N_TEM, C), jnp.float32)
    params = init_params(kw, C)
    packed = pack_params(params, C, N_TEM)

    out = attfu_forward(l_pro, l_tem, packed, C)
    out = jax.block_until_ready(out)
    assert out.shape == (B, 1, C), out.shape

    # References computed at highest matmul precision so the comparison isolates kernel error.
    with jax.default_matmul_precision("highest"):
        ref_bf = attfu_ref_bf16emu(l_pro, l_tem, params, C)   # bf16 rounding points emulated
        ref_f32 = attfu_ref(l_pro, l_tem, params, C)          # full-f32 PyTorch-equivalent

    # (1) Tight check against the bf16-emulated reference: verifies packing offsets, the
    #     split concat-matmul, the folded-mean K-tiling and the erf approximation.
    np.testing.assert_allclose(np.asarray(out), np.asarray(ref_bf), rtol=5e-3, atol=5e-3)

    # (2) Against the full-f32 reference: tolerance additionally covers the bf16 storage of
    #     the Mlp weights and the bf16 MXU operands (f32 accumulation throughout).
    np.testing.assert_allclose(np.asarray(out), np.asarray(ref_f32), rtol=1e-2, atol=1e-2)

    print("KERNEL_OK")
</pallas_src>

<mosaic_0001>
module attributes {stable_mosaic.version = 11 : i64} {
  func.func @_attfu_kernel(%arg0: memref<2x32xf32, #tpu.memory_space<vmem>>, %arg1: memref<2x256xf32, #tpu.memory_space<vmem>>, %arg2: memref<24x256xf32, #tpu.memory_space<vmem>>, %arg3: memref<96x256xbf16, #tpu.memory_space<vmem>>, %arg4: memref<2x32xf32, #tpu.memory_space<vmem>>) attributes {dimension_semantics = [], scalar_prefetch = 0 : i64, scratch_operands = 0 : i64, tpu.core_type = #tpu.core_type<tc>} {
    %c0 = arith.constant 0 : index
    %c0_0 = arith.constant 0 : index
    %0 = vector.load %arg0[%c0, %c0_0] : memref<2x32xf32, #tpu.memory_space<vmem>>, vector<2x32xf32>
    %c0_1 = arith.constant 0 : index
    %c0_2 = arith.constant 0 : index
    %1 = vector.load %arg1[%c0_1, %c0_2] : memref<2x256xf32, #tpu.memory_space<vmem>>, vector<2x256xf32>
    %c0_3 = arith.constant 0 : index
    %c0_4 = arith.constant 0 : index
    %2 = vector.load %arg2[%c0_3, %c0_4] : memref<24x256xf32, #tpu.memory_space<vmem>>, vector<8x32xf32>
    %c0_5 = arith.constant 0 : index
    %c128 = arith.constant 128 : index
    %3 = vector.load %arg2[%c0_5, %c128] : memref<24x256xf32, #tpu.memory_space<vmem>>, vector<8x64xf32>
    %c8 = arith.constant 8 : index
    %c0_6 = arith.constant 0 : index
    %4 = vector.load %arg2[%c8, %c0_6] : memref<24x256xf32, #tpu.memory_space<vmem>>, vector<8x256xf32>
    %c16 = arith.constant 16 : index
    %c0_7 = arith.constant 0 : index
    %5 = vector.load %arg2[%c16, %c0_7] : memref<24x256xf32, #tpu.memory_space<vmem>>, vector<2x256xf32>
    %6 = vector.extract_strided_slice %5 {offsets = [0, 0], sizes = [1, 256], strides = [1, 1]} : vector<2x256xf32> to vector<1x256xf32>
    %7 = vector.extract_strided_slice %5 {offsets = [1, 0], sizes = [1, 32], strides = [1, 1]} : vector<2x256xf32> to vector<1x32xf32>
    %cst = arith.constant dense<0.000000e+00> : vector<2x8xf32>
    %8 = tpu.matmul %0, %2, %cst {dimension_numbers = #tpu.dot_dimension_numbers<[1], [1], [0], [0], [0, 0, 1, 0], [], []>} : vector<2x32xf32>, vector<8x32xf32>, vector<2x8xf32> -> vector<2x8xf32>
    %cst_8 = arith.constant dense<0.000000e+00> : vector<2x8xf32>
    %9 = tpu.matmul %1, %4, %cst_8 {dimension_numbers = #tpu.dot_dimension_numbers<[1], [1], [0], [0], [0, 0, 1, 0], [], []>} : vector<2x256xf32>, vector<8x256xf32>, vector<2x8xf32> -> vector<2x8xf32>
    %10 = arith.addf %8, %9 : vector<2x8xf32>
    %cst_9 = arith.constant 0.000000e+00 : f32
    %11 = vector.broadcast %cst_9 : f32 to vector<2x8xf32>
    %12 = arith.maximumf %10, %11 : vector<2x8xf32>
    %cst_10 = arith.constant dense<0.000000e+00> : vector<2x64xf32>
    %13 = tpu.matmul %12, %3, %cst_10 {dimension_numbers = #tpu.dot_dimension_numbers<[1], [0], [0], [1], [0, 0, 1, 1], [], []>} : vector<2x8xf32>, vector<8x64xf32>, vector<2x64xf32> -> vector<2x64xf32>
    %14 = arith.negf %13 : vector<2x64xf32>
    %15 = math.exp %14 : vector<2x64xf32>
    %cst_11 = arith.constant 1.000000e+00 : f32
    %16 = vector.broadcast %cst_11 : f32 to vector<2x64xf32>
    %17 = arith.addf %16, %15 : vector<2x64xf32>
    %18 = arith.divf %16, %17 : vector<2x64xf32>
    %c0_12 = arith.constant 0 : index
    %c0_13 = arith.constant 0 : index
    %19 = vector.load %arg3[%c0_12, %c0_13] : memref<96x256xbf16, #tpu.memory_space<vmem>>, vector<64x256xbf16>
    %c64 = arith.constant 64 : index
    %c0_14 = arith.constant 0 : index
    %20 = vector.load %arg3[%c64, %c0_14] : memref<96x256xbf16, #tpu.memory_space<vmem>>, vector<32x256xbf16>
    %21 = arith.truncf %18 : vector<2x64xf32> to vector<2x64xbf16>
    %cst_15 = arith.constant dense<0.000000e+00> : vector<2x256xf32>
    %22 = tpu.matmul %21, %19, %cst_15 {dimension_numbers = #tpu.dot_dimension_numbers<[1], [0], [0], [1], [0, 0, 1, 1], [], []>} : vector<2x64xbf16>, vector<64x256xbf16>, vector<2x256xf32> -> vector<2x256xf32>
    %23 = vector.broadcast %6 : vector<1x256xf32> to vector<2x256xf32>
    %24 = arith.addf %22, %23 : vector<2x256xf32>
    %cst_16 = arith.constant 5.000000e-01 : f32
    %25 = vector.broadcast %cst_16 : f32 to vector<2x256xf32>
    %26 = arith.mulf %25, %24 : vector<2x256xf32>
    %cst_17 = arith.constant 0.707106769 : f32
    %27 = vector.broadcast %cst_17 : f32 to vector<2x256xf32>
    %28 = arith.mulf %24, %27 : vector<2x256xf32>
    %29 = math.absf %28 : vector<2x256xf32>
    %cst_18 = arith.constant 0.327591091 : f32
    %30 = vector.broadcast %cst_18 : f32 to vector<2x256xf32>
    %31 = arith.mulf %30, %29 : vector<2x256xf32>
    %cst_19 = arith.constant 1.000000e+00 : f32
    %32 = vector.broadcast %cst_19 : f32 to vector<2x256xf32>
    %33 = arith.addf %32, %31 : vector<2x256xf32>
    %34 = tpu.reciprocal %33 {approx = true} : vector<2x256xf32> -> vector<2x256xf32>
    %cst_20 = arith.constant 1.06140542 : f32
    %35 = vector.broadcast %cst_20 : f32 to vector<2x256xf32>
    %36 = arith.mulf %35, %34 : vector<2x256xf32>
    %cst_21 = arith.constant -1.45315206 : f32
    %37 = vector.broadcast %cst_21 : f32 to vector<2x256xf32>
    %38 = arith.addf %36, %37 : vector<2x256xf32>
    %39 = arith.mulf %38, %34 : vector<2x256xf32>
    %cst_22 = arith.constant 1.42141378 : f32
    %40 = vector.broadcast %cst_22 : f32 to vector<2x256xf32>
    %41 = arith.addf %39, %40 : vector<2x256xf32>
    %42 = arith.mulf %41, %34 : vector<2x256xf32>
    %cst_23 = arith.constant -0.284496725 : f32
    %43 = vector.broadcast %cst_23 : f32 to vector<2x256xf32>
    %44 = arith.addf %42, %43 : vector<2x256xf32>
    %45 = arith.mulf %44, %34 : vector<2x256xf32>
    %cst_24 = arith.constant 0.254829586 : f32
    %46 = vector.broadcast %cst_24 : f32 to vector<2x256xf32>
    %47 = arith.addf %45, %46 : vector<2x256xf32>
    %48 = arith.mulf %47, %34 : vector<2x256xf32>
    %cst_25 = arith.constant 0.000000e+00 : f32
    %49 = vector.broadcast %cst_25 : f32 to vector<2x256xf32>
    %50 = arith.subf %49, %29 : vector<2x256xf32>
    %51 = arith.mulf %50, %29 : vector<2x256xf32>
    %52 = math.exp %51 : vector<2x256xf32>
    %53 = arith.mulf %48, %52 : vector<2x256xf32>
    %cst_26 = arith.constant 1.000000e+00 : f32
    %54 = vector.broadcast %cst_26 : f32 to vector<2x256xf32>
    %55 = arith.subf %54, %53 : vector<2x256xf32>
    %cst_27 = arith.constant 0.000000e+00 : f32
    %56 = vector.broadcast %cst_27 : f32 to vector<2x256xf32>
    %57 = arith.cmpf oge, %28, %56 : vector<2x256xf32>
    %cst_28 = arith.constant 0.000000e+00 : f32
    %58 = vector.broadcast %cst_28 : f32 to vector<2x256xf32>
    %59 = arith.subf %58, %55 : vector<2x256xf32>
    %60 = arith.select %57, %55, %59 : vector<2x256xi1>, vector<2x256xf32>
    %cst_29 = arith.constant 1.000000e+00 : f32
    %61 = vector.broadcast %cst_29 : f32 to vector<2x256xf32>
    %62 = arith.addf %61, %60 : vector<2x256xf32>
    %63 = arith.mulf %26, %62 : vector<2x256xf32>
    %64 = arith.truncf %63 : vector<2x256xf32> to vector<2x256xbf16>
    %cst_30 = arith.constant dense<0.000000e+00> : vector<2x32xf32>
    %65 = tpu.matmul %64, %20, %cst_30 {dimension_numbers = #tpu.dot_dimension_numbers<[1], [1], [0], [0], [0, 0, 1, 0], [], []>} : vector<2x256xbf16>, vector<32x256xbf16>, vector<2x32xf32> -> vector<2x32xf32>
    %66 = vector.broadcast %7 : vector<1x32xf32> to vector<2x32xf32>
    %67 = arith.addf %65, %66 : vector<2x32xf32>
    %68 = vector.extract_strided_slice %18 {offsets = [0, 0], sizes = [2, 32], strides = [1, 1]} : vector<2x64xf32> to vector<2x32xf32>
    %69 = arith.addf %67, %68 : vector<2x32xf32>
    %c0_31 = arith.constant 0 : index
    %c0_32 = arith.constant 0 : index
    %70 = vector.load %arg4[%c0_31, %c0_32] : memref<2x32xf32, #tpu.memory_space<vmem>>, vector<2x32xf32>
    tpu.vector_store %arg4[%c0_31, %c0_32], %69 {strides = array<i32>} : memref<2x32xf32, #tpu.memory_space<vmem>>, vector<2x32xf32>,
    return
  }
}

</mosaic_0001>

<llo_original>
// kernel: tpu_custom_call.1
$region0: #{tpu_custom_call.1}
  #allocation0 [shape = 'u32[]', space=smem, size = 0x4, offset = 0x4, fixed_abs, tag = 'smem constant byte address 0x4 - core index']
  #allocation1 [shape = 'u32[72,128]{1,0:T(1,128)}', space=vmem, size = 0x9000, scoped, tag = 'internal scratch']
  %s0 = inlined_call_operand.hbm [shape: f32[2,32], index: 0, kind: input, shape index: {}]
  %s1 = inlined_call_operand.hbm [shape: f32[2,256], index: 1, kind: input, shape index: {}]
  %s2 = inlined_call_operand.hbm [shape: f32[24,256], index: 2, kind: input, shape index: {}]
  %s3 = inlined_call_operand.hbm [shape: bf16[96,256], index: 3, kind: input, shape index: {}]
  %s4 = inlined_call_operand.hbm [shape: f32[2,32], index: 4, kind: output, shape index: {}]
  %s5 = sld [smem:[#allocation0]]
  $region42: #{tpu_custom_call.1} parent=0
    _
  %s7 = ssub.s32 1, %s5
  %s8 = scalar_select 0, %s7, %s5
  $region1: #{tpu_custom_call.1} parent=0
    #allocation2 [shape = 'u8[1024]{0}', space=vmem, size = 0x400, scoped, tag = 'input window, operand 0, single buffered']
    #allocation3 [shape = 's32[1]{0}', space=sflag, size = 0x4, scoped, tag = 'scoped memory for tpu_custom_call.1']
    #allocation4 [shape = 's32[1]{0}', space=sflag, size = 0x4, scoped, tag = 'scoped memory for tpu_custom_call.1']
    #allocation5 [shape = 'u8[2048]{0}', space=vmem, size = 0x800, scoped, tag = 'input window, operand 1, single buffered']
    #allocation6 [shape = 's32[1]{0}', space=sflag, size = 0x4, scoped, tag = 'scoped memory for tpu_custom_call.1']
    #allocation7 [shape = 'u8[24576]{0}', space=vmem, size = 0x6000, scoped, tag = 'input window, operand 2, single buffered']
    #allocation8 [shape = 'u8[49152]{0}', space=vmem, size = 0xc000, scoped, tag = 'input window, operand 3, single buffered']
    #allocation9 [shape = 's32[1]{0}', space=sflag, size = 0x4, scoped, tag = 'scoped memory for tpu_custom_call.1']
    #allocation10 [shape = 'u8[1024]{0}', space=vmem, size = 0x400, scoped, tag = 'output window, operand 0, single buffered']
    %9 = vsyncpa [#allocation3], 0
    %10 = vsyncpa [#allocation6], 0
    %11 = vsyncpa [#allocation9], 0
    %12 = vsyncpa [#allocation4], 0
    // Predicated region
    $region2: #{tpu_custom_call.1} parent=1 // pred_check
      _
    $region3: #{tpu_custom_call.1} parent=1 // pred_check_branch
      %14 = sbr.rel (0) target = $region5
    $region4: #{tpu_custom_call.1} parent=1 // pred_region
      %16 = vsyncadd [#allocation3], 0
      %s18 = sshll.u32 %s0, 4
      %s19 = int_to_ptr.hbm [resolvable:$true] %s18
      %s20 = sshll.u32 [#allocation2], 4
      %s21 = int_to_ptr.vmem [resolvable:$true] %s20
      %23 = dma.hbm_to_vmem [thread:$0]  %s19, 32, %s21, [#allocation3]
    $region5: #{tpu_custom_call.1} parent=1 // pred_fallthru
      _
    // Predicated region
    $region6: #{tpu_custom_call.1} parent=1 // pred_check
      _
    $region7: #{tpu_custom_call.1} parent=1 // pred_check_branch
      %25 = sbr.rel (0) target = $region9
    $region8: #{tpu_custom_call.1} parent=1 // pred_region
      %27 = vsyncadd [#allocation6], 0
      %s29 = sshll.u32 %s1, 4
      %s30 = int_to_ptr.hbm [resolvable:$true] %s29
      %s31 = sshll.u32 [#allocation5], 4
      %s32 = int_to_ptr.vmem [resolvable:$true] %s31
      %34 = dma.hbm_to_vmem [thread:$0]  %s30, 64, %s32, [#allocation6]
    $region9: #{tpu_custom_call.1} parent=1 // pred_fallthru
      _
    // Predicated region
    $region10: #{tpu_custom_call.1} parent=1 // pred_check
      _
    $region11: #{tpu_custom_call.1} parent=1 // pred_check_branch
      %36 = sbr.rel (0) target = $region13
    $region12: #{tpu_custom_call.1} parent=1 // pred_region
      %38 = vsyncadd [#allocation6], 0
      %s39 = sshll.u32 %s2, 4
      %s40 = int_to_ptr.hbm [resolvable:$true] %s39
      %s41 = sshll.u32 [#allocation7], 4
      %s42 = int_to_ptr.vmem [resolvable:$true] %s41
      %47 = dma.hbm_to_vmem [thread:$0]  %s40, 768, %s42, [#allocation6], 256, 256, 16
    $region13: #{tpu_custom_call.1} parent=1 // pred_fallthru
      _
    // Predicated region
    $region14: #{tpu_custom_call.1} parent=1 // pred_check
      _
    $region15: #{tpu_custom_call.1} parent=1 // pred_check_branch
      %49 = sbr.rel (0) target = $region17
    $region16: #{tpu_custom_call.1} parent=1 // pred_region
      %51 = vsyncadd [#allocation9], 0
      %s52 = sshll.u32 %s3, 4
      %s53 = int_to_ptr.hbm [resolvable:$true] %s52
      %s54 = sshll.u32 [#allocation8], 4
      %s55 = int_to_ptr.vmem [resolvable:$true] %s54
      %60 = dma.hbm_to_vmem [thread:$0]  %s53, 1536, %s55, [#allocation9], 128, 128, 8
    $region17: #{tpu_custom_call.1} parent=1 // pred_fallthru
      _
    // Predicated region
    $region18: #{tpu_custom_call.1} parent=1 // pred_check
      _
    $region19: #{tpu_custom_call.1} parent=1 // pred_check_branch
      %62 = sbr.rel (0) target = $region21
    $region20: #{tpu_custom_call.1} parent=1 // pred_region
      %64 = dma.done [#allocation3], 32
    $region21: #{tpu_custom_call.1} parent=1 // pred_fallthru
      _
    // Predicated region
    $region22: #{tpu_custom_call.1} parent=1 // pred_check
      _
    $region23: #{tpu_custom_call.1} parent=1 // pred_check_branch
      %66 = sbr.rel (0) target = $region25
    $region24: #{tpu_custom_call.1} parent=1 // pred_region
      %68 = dma.done [#allocation6], 64
    $region25: #{tpu_custom_call.1} parent=1 // pred_fallthru
      _
    // Predicated region
    $region26: #{tpu_custom_call.1} parent=1 // pred_check
      _
    $region27: #{tpu_custom_call.1} parent=1 // pred_check_branch
      %70 = sbr.rel (0) target = $region29
    $region28: #{tpu_custom_call.1} parent=1 // pred_region
      %72 = dma.done [#allocation6], 768
    $region29: #{tpu_custom_call.1} parent=1 // pred_fallthru
      _
    // Predicated region
    $region30: #{tpu_custom_call.1} parent=1 // pred_check
      _
    $region31: #{tpu_custom_call.1} parent=1 // pred_check_branch
      %74 = sbr.rel (0) target = $region33
    $region32: #{tpu_custom_call.1} parent=1 // pred_region
      %76 = dma.done [#allocation9], 1536
    $region33: #{tpu_custom_call.1} parent=1 // pred_fallthru
      _
    %v78 = vld [vmem:[#allocation2] sm:$0x3]
    %v79 = vld [vmem:[#allocation5] sm:$0xf]
    %v80 = vld [vmem:[#allocation7] sm:$0xff]
    %v81 = vld [vmem:[#allocation7 + $0x8] sm:$0xff]
    %v82 = vld [vmem:[#allocation7 + $0x10] sm:$0xff]
    %v83 = vld [vmem:[#allocation7 + $0x18] sm:$0xff]
    %v84 = vld [vmem:[#allocation7 + $0x20] sm:$0x3]
    %v85 = vld [vmem:[#allocation7 + $0x28] sm:$0x3]
    %87 = vst [vmem:[#allocation1] ss:$4 sm:$0xff] %v79
    %v88 = vld.sshfl [vmem:[#allocation1] sm:$0xff pattern:$0x73625140]
    %v89 = vld.sshfl [vmem:[#allocation1 + $0x8] sm:$0xff pattern:$0x73625140]
    %92 = vmatpush.xpose.msra.mxu0 0.0
    %93 = vmatpush.xpose.msra.mxu0 0.0
    %94 = vmatpush.xpose.msra.mxu0 0.0
    %95 = vmatpush.xpose.msra.mxu0 0.0
    %96 = vmatpush.xpose.msra.mxu0 0.0
    %97 = vmatpush.xpose.msra.mxu0 0.0
    %98 = vmatpush.xpose.msra.mxu0 0.0
    %99 = vmatpush.xpose.msra.mxu0 0.0
    %100 = vmatpush.xpose.msra.mxu0 0.0
    %101 = vmatpush.xpose.msra.mxu0 0.0
    %102 = vmatpush.xpose.msra.mxu0 0.0
    %103 = vmatpush.xpose.msra.mxu0 0.0
    %104 = vmatpush.xpose.msra.mxu0 0.0
    %105 = vmatpush.xpose.msra.mxu0 0.0
    %106 = vmatpush.xpose.msra.mxu0 0.0
    %107 = vmatpush.xpose.msra.mxu0 %v82
    %108 = vmatmul.f32.gmra.mxu0 %v88
    %v109 = vpop.f32.mrf.mxu0
    %v110 = vadd.f32 0.0, %v109
    %111 = vdwg.mxu0
    %112 = vmatpush.xpose.msra.mxu0 0.0
    %113 = vmatpush.xpose.msra.mxu0 0.0
    %114 = vmatpush.xpose.msra.mxu0 0.0
    %115 = vmatpush.xpose.msra.mxu0 0.0
    %116 = vmatpush.xpose.msra.mxu0 0.0
    %117 = vmatpush.xpose.msra.mxu0 0.0
    %118 = vmatpush.xpose.msra.mxu0 0.0
    %119 = vmatpush.xpose.msra.mxu0 0.0
    %120 = vmatpush.xpose.msra.mxu0 0.0
    %121 = vmatpush.xpose.msra.mxu0 0.0
    %122 = vmatpush.xpose.msra.mxu0 0.0
    %123 = vmatpush.xpose.msra.mxu0 0.0
    %124 = vmatpush.xpose.msra.mxu0 0.0
    %125 = vmatpush.xpose.msra.mxu0 0.0
    %126 = vmatpush.xpose.msra.mxu0 0.0
    %127 = vmatpush.xpose.msra.mxu0 %v83
    %128 = vmatmul.f32.gmra.mxu0 %v89
    %v129 = vpop.f32.mrf.mxu0
    %v130 = vadd.f32 %v110, %v129
    %131 = vdwg.mxu0
    %vm132 = vcmask 261120
    %v134 = vsel %vm132, %v78, 0
    %v137 = vsel %vm132, %v80, 0
    %139 = vmatpush.xpose.msra.mxu0 0.0
    %140 = vmatpush.xpose.msra.mxu0 0.0
    %141 = vmatpush.xpose.msra.mxu0 0.0
    %142 = vmatpush.xpose.msra.mxu0 0.0
    %143 = vmatpush.xpose.msra.mxu0 0.0
    %144 = vmatpush.xpose.msra.mxu0 0.0
    %145 = vmatpush.xpose.msra.mxu0 0.0
    %146 = vmatpush.xpose.msra.mxu0 0.0
    %147 = vmatpush.xpose.msra.mxu0 0.0
    %148 = vmatpush.xpose.msra.mxu0 0.0
    %149 = vmatpush.xpose.msra.mxu0 0.0
    %150 = vmatpush.xpose.msra.mxu0 0.0
    %151 = vmatpush.xpose.msra.mxu0 0.0
    %152 = vmatpush.xpose.msra.mxu0 0.0
    %153 = vmatpush.xpose.msra.mxu0 0.0
    %154 = vmatpush.xpose.msra.mxu0 %v137
    %155 = vmatmul.f32.gmra.mxu0 %v134
    %v156 = vpop.f32.mrf.mxu0
    %v157 = vadd.f32 %v130, %v156
    %158 = vdwg.mxu0
    %v159 = vmax.f32 %v157, 0.0
    %vm160 = vcmask 64512
    %v162 = vsel %vm160, %v159, 0
    %164 = vmatpush.msra.mxu0 0.0
    %165 = vmatpush.msra.mxu0 0.0
    %166 = vmatpush.msra.mxu0 0.0
    %167 = vmatpush.msra.mxu0 0.0
    %168 = vmatpush.msra.mxu0 0.0
    %169 = vmatpush.msra.mxu0 0.0
    %170 = vmatpush.msra.mxu0 0.0
    %171 = vmatpush.msra.mxu0 0.0
    %172 = vmatpush.msra.mxu0 0.0
    %173 = vmatpush.msra.mxu0 0.0
    %174 = vmatpush.msra.mxu0 0.0
    %175 = vmatpush.msra.mxu0 0.0
    %176 = vmatpush.msra.mxu0 0.0
    %177 = vmatpush.msra.mxu0 0.0
    %178 = vmatpush.msra.mxu0 0.0
    %179 = vmatpush.msra.mxu0 %v81
    %180 = vmatmul.f32.gmra.mxu0 %v162
    %v181 = vpop.f32.mrf.mxu0
    %v182 = vadd.f32 0.0, %v181
    %183 = vdwg.mxu0
    %v184 = vxor.u32 %v182, 2147483648
    %v185 = vmul.f32 %v184, 1.442695
    %v186 = vpow.pop %v185
    %v187 = vadd.f32 %v186, 1.0
    %v188 = vrcp.pop %v187
    %v189 = vmul.f32 %v187, %v188
    %v190 = vsub.f32 1.0, %v189
    %v191 = vmul.f32 %v188, %v190
    %v192 = vadd.f32 %v188, %v191
    %vm193 = vweird.f32 %v187
    %vm194 = vweird.f32 %v188
    %vm195 = vmor %vm193, %vm194
    %v196 = vsel %vm195, %v188, %v192
    %v197 = vand.u32 2147483647, %v187
    %vm198 = vcmp.eq.f32.partialorder %v197, 8.507059e+37
    %v199 = vand.u32 %v187, 2147483648
    %v200 = vor.u32 1.1754944e-38, %v199
    %v201 = vsel %vm198, %v200, %v196
    %v202 = vmul.f32 1.0, %v201
    %v203 = vld [vmem:[#allocation8] sm:$0xff]
    %v204 = vld [vmem:[#allocation8 + $0x8] sm:$0xff]
    %v205 = vld [vmem:[#allocation8 + $0x10] sm:$0xff]
    %v206 = vld [vmem:[#allocation8 + $0x18] sm:$0xff]
    %v207 = vld [vmem:[#allocation8 + $0x20] sm:$0xff]
    %v208 = vld [vmem:[#allocation8 + $0x28] sm:$0xff]
    %v209 = vld [vmem:[#allocation8 + $0x30] sm:$0xff]
    %v210 = vld [vmem:[#allocation8 + $0x38] sm:$0xff]
    %v211 = vld [vmem:[#allocation8 + $0x40] sm:$0xff]
    %v212 = vld [vmem:[#allocation8 + $0x48] sm:$0xff]
    %v213 = vld [vmem:[#allocation8 + $0x50] sm:$0xff]
    %v214 = vld [vmem:[#allocation8 + $0x58] sm:$0xff]
    %v215 = vpack.c.bf16 %v202, %v202
    %v216 = vperm.slane %v84, 0
    %v217 = vperm.slane %v85, 0
    %v226 = vunpack.c.l.b16 %v203
    %v227 = vunpack.c.h.b16 %v203
    %v228 = vunpack.c.l.b16 %v204
    %v229 = vunpack.c.h.b16 %v204
    %v230 = vunpack.c.l.b16 %v205
    %v231 = vunpack.c.h.b16 %v205
    %v232 = vunpack.c.l.b16 %v206
    %v233 = vunpack.c.h.b16 %v206
    %v234 = vunpack.c.l.b16 %v207
    %v235 = vunpack.c.h.b16 %v207
    %v236 = vunpack.c.l.b16 %v208
    %v237 = vunpack.c.h.b16 %v208
    %v238 = vunpack.c.l.b16 %v209
    %v239 = vunpack.c.h.b16 %v209
    %v240 = vunpack.c.l.b16 %v210
    %v241 = vunpack.c.h.b16 %v210
    %v242 = vpack.c.b16 %v228, %v226
    %v243 = vpack.c.b16 %v229, %v227
    %v244 = vpack.c.b16 %v232, %v230
    %v245 = vpack.c.b16 %v233, %v231
    %v246 = vpack.c.b16 %v236, %v234
    %v247 = vpack.c.b16 %v237, %v235
    %v248 = vpack.c.b16 %v240, %v238
    %v249 = vpack.c.b16 %v241, %v239
    %vm258 = vcmask 523264
    %v260 = vsel %vm258, %v215, 0
    %262 = vmatpush.bf16.msra.mxu0 0
    %263 = vmatpush.bf16.msra.mxu0 0
    %264 = vmatpush.bf16.msra.mxu0 0
    %265 = vmatpush.bf16.msra.mxu0 0
    %266 = vmatpush.bf16.msra.mxu0 %v248
    %267 = vmatpush.bf16.msra.mxu0 %v246
    %268 = vmatpush.bf16.msra.mxu0 %v244
    %269 = vmatpush.bf16.msra.mxu0 %v242
    %270 = vmatmul.bf16.gmra.mxu0 %v260
    %v271 = vpop.f32.mrf.mxu0
    %v272 = vadd.f32 %v216, %v271
    %v273 = vpop.f32.mrf.mxu0
    %274 = vdwg.mxu0
    %275 = vmatpush.bf16.msra.mxu0 0
    %276 = vmatpush.bf16.msra.mxu0 0
    %277 = vmatpush.bf16.msra.mxu0 0
    %278 = vmatpush.bf16.msra.mxu0 0
    %279 = vmatpush.bf16.msra.mxu0 %v249
    %280 = vmatpush.bf16.msra.mxu0 %v247
    %281 = vmatpush.bf16.msra.mxu0 %v245
    %282 = vmatpush.bf16.msra.mxu0 %v243
    %283 = vmatmul.bf16.gmra.mxu0 %v260
    %v284 = vpop.f32.mrf.mxu0
    %v285 = vadd.f32 %v217, %v284
    %v286 = vpop.f32.mrf.mxu0
    %287 = vdwg.mxu0
    %v288 = vmul.f32 %v272, 0.5
    %v289 = vmul.f32 %v285, 0.5
    %v290 = vmul.f32 %v272, 0.70710677
    %v291 = vmul.f32 %v285, 0.70710677
    %v292 = vand.u32 2147483647, %v290
    %v293 = vand.u32 2147483647, %v291
    %v294 = vmul.f32 %v292, 0.3275911
    %v295 = vmul.f32 %v293, 0.3275911
    %v296 = vadd.f32 %v294, 1.0
    %v297 = vadd.f32 %v295, 1.0
    %v298 = vrcp.pop %v296
    %v299 = vrcp.pop %v297
    %v300 = vmul.f32 %v298, 1.0614054
    %v301 = vmul.f32 %v299, 1.0614054
    %v302 = vadd.f32 %v300, -1.4531521
    %v303 = vadd.f32 %v301, -1.4531521
    %v304 = vmul.f32 %v302, %v298
    %v305 = vmul.f32 %v303, %v299
    %v306 = vadd.f32 %v304, 1.4214138
    %v307 = vadd.f32 %v305, 1.4214138
    %v308 = vmul.f32 %v306, %v298
    %v309 = vmul.f32 %v307, %v299
    %v310 = vadd.f32 %v308, -0.28449672
    %v311 = vadd.f32 %v309, -0.28449672
    %v312 = vmul.f32 %v310, %v298
    %v313 = vmul.f32 %v311, %v299
    %v314 = vadd.f32 %v312, 0.2548296
    %v315 = vadd.f32 %v313, 0.2548296
    %v316 = vmul.f32 %v314, %v298
    %v317 = vmul.f32 %v315, %v299
    %v318 = vsub.f32 0.0, %v292
    %v319 = vsub.f32 0.0, %v293
    %v320 = vmul.f32 %v318, %v292
    %v321 = vmul.f32 %v319, %v293
    %v322 = vmul.f32 %v320, 1.442695
    %v323 = vpow.pop %v322
    %v324 = vmul.f32 %v321, 1.442695
    %v325 = vpow.pop %v324
    %v326 = vmul.f32 %v316, %v323
    %v327 = vmul.f32 %v317, %v325
    %v328 = vsub.f32 1.0, %v326
    %v329 = vsub.f32 1.0, %v327
    %vm330 = vcmp.ge.f32.partialorder %v290, 0.0
    %vm331 = vcmp.ge.f32.partialorder %v291, 0.0
    %v332 = vsub.f32 0.0, %v328
    %v333 = vsub.f32 0.0, %v329
    %v334 = vsel %vm330, %v328, %v332
    %v335 = vsel %vm331, %v329, %v333
    %v336 = vadd.f32 %v334, 1.0
    %v337 = vadd.f32 %v335, 1.0
    %v338 = vmul.f32 %v288, %v336
    %v339 = vmul.f32 %v289, %v337
    %v340 = vpack.c.bf16 %v338, %v338
    %v341 = vpack.c.bf16 %v339, %v339
    %v342 = vperm.slane %v84, 1
    %v347 = vunpack.c.l.b16 %v211
    %v348 = vunpack.c.h.b16 %v211
    %v349 = vunpack.c.l.b16 %v212
    %v350 = vunpack.c.h.b16 %v212
    %v351 = vunpack.c.l.b16 %v213
    %v352 = vunpack.c.h.b16 %v213
    %v353 = vunpack.c.l.b16 %v214
    %v354 = vunpack.c.h.b16 %v214
    %v355 = vpack.c.b16 %v349, %v347
    %v356 = vpack.c.b16 %v350, %v348
    %v357 = vpack.c.b16 %v353, %v351
    %v358 = vpack.c.b16 %v354, %v352
    %363 = vmatpush.bf16.xpose.msra.mxu0 0
    %364 = vmatpush.bf16.xpose.msra.mxu0 0
    %365 = vmatpush.bf16.xpose.msra.mxu0 0
    %366 = vmatpush.bf16.xpose.msra.mxu0 0
    %367 = vmatpush.bf16.xpose.msra.mxu0 0
    %368 = vmatpush.bf16.xpose.msra.mxu0 0
    %369 = vmatpush.bf16.xpose.msra.mxu0 %v357
    %370 = vmatpush.bf16.xpose.msra.mxu0 %v355
    %371 = vmatmul.bf16.gmra.mxu0 %v340
    %v372 = vpop.f32.mrf.mxu0
    %v373 = vadd.f32 %v342, %v372
    %v374 = vpop.f32.mrf.mxu0
    %375 = vdwg.mxu0
    %376 = vmatpush.bf16.xpose.msra.mxu0 0
    %377 = vmatpush.bf16.xpose.msra.mxu0 0
    %378 = vmatpush.bf16.xpose.msra.mxu0 0
    %379 = vmatpush.bf16.xpose.msra.mxu0 0
    %380 = vmatpush.bf16.xpose.msra.mxu0 0
    %381 = vmatpush.bf16.xpose.msra.mxu0 0
    %382 = vmatpush.bf16.xpose.msra.mxu0 %v358
    %383 = vmatpush.bf16.xpose.msra.mxu0 %v356
    %384 = vmatmul.bf16.gmra.mxu0 %v341
    %v385 = vpop.f32.mrf.mxu0
    %v386 = vadd.f32 %v373, %v385
    %v387 = vpop.f32.mrf.mxu0
    %388 = vdwg.mxu0
    %v389 = vadd.f32 %v386, %v202
    %vm390 = vcmask 254976
    %391 = vst.msk [vmem:[#allocation10] sm:$0x3] %vm390, %v389
    // Predicated region
    $region34: #{tpu_custom_call.1} parent=1 // pred_check
      _
    $region35: #{tpu_custom_call.1} parent=1 // pred_check_branch
      %393 = sbr.rel (0) target = $region37
    $region36: #{tpu_custom_call.1} parent=1 // pred_region
      %395 = vsyncadd [#allocation4], 0
      %s397 = sshll.u32 [#allocation10], 4
      %s398 = int_to_ptr.vmem [resolvable:$true] %s397
      %s399 = sshll.u32 %s4, 4
      %s400 = int_to_ptr.hbm [resolvable:$true] %s399
      %402 = dma.vmem_to_hbm [thread:$0]  %s398, 32, %s400, [#allocation4]
    $region37: #{tpu_custom_call.1} parent=1 // pred_fallthru
      _
    // Predicated region
    $region38: #{tpu_custom_call.1} parent=1 // pred_check
      _
    $region39: #{tpu_custom_call.1} parent=1 // pred_check_branch
      %404 = sbr.rel (0) target = $region41
    $region40: #{tpu_custom_call.1} parent=1 // pred_region
      %406 = dma.done [#allocation4], 32
    $region41: #{tpu_custom_call.1} parent=1 // pred_fallthru
      _
    %407 = vsyncpa [#allocation3], 1
    %408 = vsyncpa [#allocation6], 1
    %409 = vsyncpa [#allocation9], 1
    %410 = vsyncpa [#allocation4], 1

</llo_original>
